<compile_context>
chip_gen: v6e
topology: v6e:2x2x1
jax: 0.10.0
libtpu: 0.0.40
codegen_flags: <defaults>
</compile_context>

<pallas_src>
import math
import jax
import jax.numpy as jnp
from jax.experimental import pallas as pl
from jax.experimental.pallas import tpu as pltpu

HIDDEN = 256  # fixed by the module definition (nn.Parameter((state_dim, 256)))


def _policy_kernel(state_ref, l1_ref, b1_ref, l2_ref, b2_ref, out_ref):
    # Each ref holds a block of Nb species.
    s = state_ref[...]        # (Nb, B, S)   compute dtype (bf16 or f32)
    w1 = l1_ref[...]          # (Nb, S, D)   compute dtype
    b1 = b1_ref[...]          # (Nb, 1, D)   f32
    w2 = l2_ref[...]          # (Nb, D, A)   compute dtype
    b2 = b2_ref[...]          # (Nb, 1, A)   f32

    # Batched matmuls on the MXU with f32 accumulation.
    h = jnp.einsum('nbs,nsd->nbd', s, w1, preferred_element_type=jnp.float32)
    h = jnp.tanh(h + b1)                       # f32 bias-add + tanh (VPU/EUP)
    h = h.astype(w2.dtype)                     # back to MXU input dtype
    o = jnp.einsum('nbd,nda->nba', h, w2, preferred_element_type=jnp.float32)
    out_ref[...] = (o + b2).astype(out_ref.dtype)


def _pick_species_block(N, B, S, D, A, compute_bytes, vmem_budget_bytes):
    """Largest species block that fits the VMEM budget (double-buffered),
    divides N exactly, and keeps >=2 grid steps when N is large (v7x TCs)."""
    per_species = (
        2 * (B * S * compute_bytes      # state tile (double-buffered)
             + S * D * compute_bytes    # w1
             + 1 * D * 4                # b1 (f32)
             + D * A * compute_bytes    # w2
             + 1 * A * 4                # b2 (f32)
             + B * A * 4)               # output tile (f32)
        + B * D * 4                     # f32 hidden activations (in-kernel temp)
    )
    nb = max(1, min(N, vmem_budget_bytes // per_species))
    if N >= 8:
        # Keep at least 2 grid steps so the parallel axis can shard across
        # v7x's two TensorCores (no-op on single-TC v5e/v6e).
        nb = min(nb, -(-N // 2))
    while N % nb != 0:      # full blocks only (keeps BlockSpecs trivially legal)
        nb -= 1
    return nb


def batched_policies_forward(state_nbs, fl1_nsd, fb1_nd, fl2_nda, fb2_na,
                             *, compute_dtype=jnp.bfloat16,
                             vmem_budget_bytes=20 * 1024 * 1024):
    """Pallas implementation of BatchedPolicies.forward (no payout)."""
    N, B, S = state_nbs.shape
    D = fl1_nsd.shape[-1]
    A = fl2_nda.shape[-1]
    out_dtype = state_nbs.dtype

    # MXU path in compute_dtype (bf16 default); biases stay f32 for the
    # f32 bias-add + tanh epilogue. Biases are reshaped to (N, 1, D)/(N, 1, A)
    # so they arrive as clean 2-D lane tiles.
    state_c = state_nbs.astype(compute_dtype)
    w1_c = fl1_nsd.astype(compute_dtype)
    w2_c = fl2_nda.astype(compute_dtype)
    b1_c = fb1_nd.reshape(N, 1, D).astype(jnp.float32)
    b2_c = fb2_na.reshape(N, 1, A).astype(jnp.float32)

    compute_bytes = jnp.dtype(compute_dtype).itemsize
    nb = _pick_species_block(N, B, S, D, A, compute_bytes, vmem_budget_bytes)
    grid = (N // nb,)

    grid_spec = pltpu.PrefetchScalarGridSpec(
        num_scalar_prefetch=0,
        grid=grid,
        in_specs=[
            pl.BlockSpec((nb, B, S), lambda n: (n, 0, 0)),
            pl.BlockSpec((nb, S, D), lambda n: (n, 0, 0)),
            pl.BlockSpec((nb, 1, D), lambda n: (n, 0, 0)),
            pl.BlockSpec((nb, D, A), lambda n: (n, 0, 0)),
            pl.BlockSpec((nb, 1, A), lambda n: (n, 0, 0)),
        ],
        out_specs=pl.BlockSpec((nb, B, A), lambda n: (n, 0, 0)),
    )

    return pl.pallas_call(
        _policy_kernel,
        out_shape=jax.ShapeDtypeStruct((N, B, A), out_dtype),
        grid_spec=grid_spec,
        compiler_params=pltpu.CompilerParams(
            dimension_semantics=("parallel",),
            # Explicit scoped-VMEM limit: safe on v5e/v6e (128 MiB physical)
            # and within v7x's 64 MiB physical ceiling.
            vmem_limit_bytes=32 * 1024 * 1024,
        ),
    )(state_c, w1_c, b1_c, w2_c, b2_c)


def init_params_and_species(key, state_dim, action_dim, num_species, std=2.0):
    """Deterministic replica of __init__ (kaiming_uniform-style bounds) and
    create_species() (gaussian noise, last species noise-free)."""
    k1, k2, k3, k4, k5, k6, k7, k8 = jax.random.split(key, 8)

    # kaiming_uniform_(a=sqrt(5)) on a (fan_in, fan_out)-shaped tensor:
    # gain = sqrt(2/(1+a^2)) = sqrt(1/3); bound = gain*sqrt(3/fan_in) = 1/sqrt(fan_in)
    bound1 = 1.0 / math.sqrt(state_dim)
    l_1 = jax.random.uniform(k1, (state_dim, HIDDEN), jnp.float32, -bound1, bound1)
    b_1 = jax.random.uniform(k2, (HIDDEN,), jnp.float32, -bound1, bound1)

    bound2 = 1.0 / math.sqrt(HIDDEN)
    l_2 = jax.random.uniform(k3, (HIDDEN, action_dim), jnp.float32, -bound2, bound2)
    b_2 = jax.random.uniform(k4, (action_dim,), jnp.float32, -bound2, bound2)

    # create_species(): per-species Gaussian noise, last species = base params.
    l1_noise = std * jax.random.normal(k5, (num_species, state_dim, HIDDEN), jnp.float32)
    b1_noise = std * jax.random.normal(k6, (num_species, HIDDEN), jnp.float32)
    l2_noise = std * jax.random.normal(k7, (num_species, HIDDEN, action_dim), jnp.float32)
    b2_noise = std * jax.random.normal(k8, (num_species, action_dim), jnp.float32)
    l1_noise = l1_noise.at[-1].set(0.0)
    b1_noise = b1_noise.at[-1].set(0.0)
    l2_noise = l2_noise.at[-1].set(0.0)
    b2_noise = b2_noise.at[-1].set(0.0)

    fl1_nsd = l_1[None] + l1_noise
    fb1_nd = b_1[None] + b1_noise
    fl2_nda = l_2[None] + l2_noise
    fb2_na = b_2[None] + b2_noise
    return fl1_nsd, fb1_nd, fl2_nda, fb2_na


def reference_forward(state_nbs, fl1_nsd, fb1_nd, fl2_nda, fb2_na):
    x = jnp.einsum('nsd,nbs->nbd', fl1_nsd, state_nbs)
    x = x + fb1_nd[:, None, :]
    x = jnp.tanh(x)
    x = jnp.einsum('nda,nbd->nba', fl2_nda, x)
    x = x + fb2_na[:, None, :]
    return x


def _run_case(key, state_dim, action_dim, num_species, batch):
    kp, ks = jax.random.split(key)
    fl1, fb1, fl2, fb2 = init_params_and_species(
        kp, state_dim, action_dim, num_species, std=2.0)
    state = jax.random.normal(ks, (num_species, batch, state_dim), jnp.float32)

    ref = reference_forward(state, fl1, fb1, fl2, fb2)

    # f32 path: exact-semantics check against the reference einsum.
    out_f32 = batched_policies_forward(state, fl1, fb1, fl2, fb2,
                                       compute_dtype=jnp.float32)
    out_f32 = jax.block_until_ready(out_f32)
    assert out_f32.shape == (num_species, batch, action_dim)
    assert jnp.allclose(out_f32, ref, rtol=1e-4, atol=1e-3), "f32 mismatch vs reference"

    # bf16 path (default / fast path): loose sanity check vs the f32 reference.
    out_bf = batched_policies_forward(state, fl1, fb1, fl2, fb2)
    out_bf = jax.block_until_ready(out_bf)
    assert out_bf.shape == (num_species, batch, action_dim)
    scale = jnp.max(jnp.abs(ref))
    max_err = jnp.max(jnp.abs(out_bf.astype(jnp.float32) - ref))
    assert max_err <= 0.08 * scale + 0.1, (
        f"bf16 path too far from reference: err={max_err}, scale={scale}")


if __name__ == "__main__":
    key = jax.random.PRNGKey(0)
    k_small, k_big = jax.random.split(key)

    # Small shapes consistent with the module: state_dim=8, action_dim=4,
    # num_species=4, batch=8  -> collapses to grid=(1,) with Nb=4.
    _run_case(k_small, state_dim=8, action_dim=4, num_species=4, batch=8)

    # Slightly larger species count to exercise the blocked multi-step grid
    # (Nb=6, grid=(2,)) including the >=2-step rule for v7x megacore.
    _run_case(k_big, state_dim=8, action_dim=4, num_species=12, batch=16)

    # TODO(synk): Auxiliary/payout branch (Linear 8->128->128->2 + softmax) is
    # only used when payout is passed; not exercised here.
    print("KERNEL_OK")
</pallas_src>

<mosaic_0001>
module attributes {stable_mosaic.version = 11 : i64} {
  func.func @_policy_kernel(%arg0: i32, %arg1: memref<4x8x8xf32, #tpu.memory_space<vmem>>, %arg2: memref<4x8x256xf32, #tpu.memory_space<vmem>>, %arg3: memref<4x1x256xf32, #tpu.memory_space<vmem>>, %arg4: memref<4x256x4xf32, #tpu.memory_space<vmem>>, %arg5: memref<4x1x4xf32, #tpu.memory_space<vmem>>, %arg6: memref<4x8x4xf32, #tpu.memory_space<vmem>>) attributes {dimension_semantics = [#tpu.dimension_semantics<parallel>], iteration_bounds = array<i64: 1>, scalar_prefetch = 0 : i64, scratch_operands = 0 : i64, tpu.core_type = #tpu.core_type<tc>, window_params = [{transform_indices = @transform_0, window_bounds = array<i64: 4, 8, 8>}, {transform_indices = @transform_1, window_bounds = array<i64: 4, 8, 256>}, {transform_indices = @transform_2, window_bounds = array<i64: 4, 1, 256>}, {transform_indices = @transform_3, window_bounds = array<i64: 4, 256, 4>}, {transform_indices = @transform_4, window_bounds = array<i64: 4, 1, 4>}, {transform_indices = @transform_5, window_bounds = array<i64: 4, 8, 4>}]} {
    %c0 = arith.constant 0 : index
    %c0_0 = arith.constant 0 : index
    %c0_1 = arith.constant 0 : index
    %0 = vector.load %arg1[%c0, %c0_0, %c0_1] : memref<4x8x8xf32, #tpu.memory_space<vmem>>, vector<4x8x8xf32>
    %c0_2 = arith.constant 0 : index
    %c0_3 = arith.constant 0 : index
    %c0_4 = arith.constant 0 : index
    %1 = vector.load %arg2[%c0_2, %c0_3, %c0_4] : memref<4x8x256xf32, #tpu.memory_space<vmem>>, vector<4x8x256xf32>
    %c0_5 = arith.constant 0 : index
    %c0_6 = arith.constant 0 : index
    %c0_7 = arith.constant 0 : index
    %2 = vector.load %arg3[%c0_5, %c0_6, %c0_7] : memref<4x1x256xf32, #tpu.memory_space<vmem>>, vector<4x1x256xf32>
    %c0_8 = arith.constant 0 : index
    %c0_9 = arith.constant 0 : index
    %c0_10 = arith.constant 0 : index
    %3 = vector.load %arg4[%c0_8, %c0_9, %c0_10] : memref<4x256x4xf32, #tpu.memory_space<vmem>>, vector<4x256x4xf32>
    %c0_11 = arith.constant 0 : index
    %c0_12 = arith.constant 0 : index
    %c0_13 = arith.constant 0 : index
    %4 = vector.load %arg5[%c0_11, %c0_12, %c0_13] : memref<4x1x4xf32, #tpu.memory_space<vmem>>, vector<4x1x4xf32>
    "tpu.trace_start"() <{level = 10 : i32, message = "nbs,nsd->nbd"}> : () -> ()
    %cst = arith.constant dense<0.000000e+00> : vector<4x8x256xf32>
    %5 = tpu.matmul %0, %1, %cst {dimension_numbers = #tpu.dot_dimension_numbers<[2], [1], [1], [2], [0, 0, 0, 1, 1, 2], [0], [0]>} : vector<4x8x8xf32>, vector<4x8x256xf32>, vector<4x8x256xf32> -> vector<4x8x256xf32>
    "tpu.trace_stop"() : () -> ()
    %6 = vector.broadcast %2 : vector<4x1x256xf32> to vector<4x8x256xf32>
    %7 = arith.addf %5, %6 : vector<4x8x256xf32>
    %8 = math.tanh %7 : vector<4x8x256xf32>
    "tpu.trace_start"() <{level = 10 : i32, message = "nbd,nda->nba"}> : () -> ()
    %cst_14 = arith.constant dense<0.000000e+00> : vector<4x8x4xf32>
    %9 = tpu.matmul %8, %3, %cst_14 {dimension_numbers = #tpu.dot_dimension_numbers<[2], [1], [1], [2], [0, 0, 0, 1, 1, 2], [0], [0]>} : vector<4x8x256xf32>, vector<4x256x4xf32>, vector<4x8x4xf32> -> vector<4x8x4xf32>
    "tpu.trace_stop"() : () -> ()
    %10 = vector.broadcast %4 : vector<4x1x4xf32> to vector<4x8x4xf32>
    %11 = arith.addf %9, %10 : vector<4x8x4xf32>
    %c0_15 = arith.constant 0 : index
    %c0_16 = arith.constant 0 : index
    %c0_17 = arith.constant 0 : index
    %12 = vector.load %arg6[%c0_15, %c0_16, %c0_17] : memref<4x8x4xf32, #tpu.memory_space<vmem>>, vector<4x8x4xf32>
    tpu.vector_store %arg6[%c0_15, %c0_16, %c0_17], %11 {strides = array<i32>} : memref<4x8x4xf32, #tpu.memory_space<vmem>>, vector<4x8x4xf32>,
    return
  }
  func.func @transform_0(%arg0: i32) -> (i32, i32, i32) {
    %c0_i32 = arith.constant 0 : i32
    %c0_i32_0 = arith.constant 0 : i32
    %c0_i32_1 = arith.constant 0 : i32
    return %arg0, %c0_i32, %c0_i32_0 : i32, i32, i32
  }
  func.func @transform_1(%arg0: i32) -> (i32, i32, i32) {
    %c0_i32 = arith.constant 0 : i32
    %c0_i32_0 = arith.constant 0 : i32
    %c0_i32_1 = arith.constant 0 : i32
    return %arg0, %c0_i32, %c0_i32_0 : i32, i32, i32
  }
  func.func @transform_2(%arg0: i32) -> (i32, i32, i32) {
    %c0_i32 = arith.constant 0 : i32
    %c0_i32_0 = arith.constant 0 : i32
    %c0_i32_1 = arith.constant 0 : i32
    return %arg0, %c0_i32, %c0_i32_0 : i32, i32, i32
  }
  func.func @transform_3(%arg0: i32) -> (i32, i32, i32) {
    %c0_i32 = arith.constant 0 : i32
    %c0_i32_0 = arith.constant 0 : i32
    %c0_i32_1 = arith.constant 0 : i32
    return %arg0, %c0_i32, %c0_i32_0 : i32, i32, i32
  }
  func.func @transform_4(%arg0: i32) -> (i32, i32, i32) {
    %c0_i32 = arith.constant 0 : i32
    %c0_i32_0 = arith.constant 0 : i32
    %c0_i32_1 = arith.constant 0 : i32
    return %arg0, %c0_i32, %c0_i32_0 : i32, i32, i32
  }
  func.func @transform_5(%arg0: i32) -> (i32, i32, i32) {
    %c0_i32 = arith.constant 0 : i32
    %c0_i32_0 = arith.constant 0 : i32
    %c0_i32_1 = arith.constant 0 : i32
    return %arg0, %c0_i32, %c0_i32_0 : i32, i32, i32
  }
}

</mosaic_0001>

<llo_original>
// kernel: tpu_custom_call.1
$region0: #{tpu_custom_call.1}
  #allocation0 [shape = 'u32[]', space=smem, size = 0x4, offset = 0x4, fixed_abs, tag = 'smem constant byte address 0x4 - core index']
  #allocation1 [shape = 'u32[144,128]{1,0:T(1,128)}', space=vmem, size = 0x12000, scoped, tag = 'internal scratch']
  %s0 = inlined_call_operand.vmem [shape: f32[4,8,8], index: 0, kind: input, shape index: {}]
  %s1 = inlined_call_operand.vmem [shape: f32[4,8,256], index: 1, kind: input, shape index: {}]
  %s2 = inlined_call_operand.vmem [shape: f32[4,1,256], index: 2, kind: input, shape index: {}]
  %s3 = inlined_call_operand.vmem [shape: f32[4,256,4], index: 3, kind: input, shape index: {}]
  %s4 = inlined_call_operand.vmem [shape: f32[4,1,4], index: 4, kind: input, shape index: {}]
  %s5 = inlined_call_operand.vmem [shape: f32[4,8,4], index: 5, kind: output, shape index: {}]
  %s6 = sld [smem:[#allocation0]]
  $region30: #{tpu_custom_call.1} parent=0
    _
  %s8 = ssub.s32 1, %s6
  %s9 = scalar_select 0, %s8, %s6
  // Predicated region
  $region2: #{tpu_custom_call.1} parent=0 // pred_check
    _
  $region3: #{tpu_custom_call.1} parent=0 // pred_check_branch
    %11 = sbr.rel (0) target = $region5
  $region4: #{tpu_custom_call.1} parent=0 // pred_region
    _
  $region5: #{tpu_custom_call.1} parent=0 // pred_fallthru
    _
  // Predicated region
  $region6: #{tpu_custom_call.1} parent=0 // pred_check
    _
  $region7: #{tpu_custom_call.1} parent=0 // pred_check_branch
    %13 = sbr.rel (0) target = $region9
  $region8: #{tpu_custom_call.1} parent=0 // pred_region
    _
  $region9: #{tpu_custom_call.1} parent=0 // pred_fallthru
    _
  // Predicated region
  $region10: #{tpu_custom_call.1} parent=0 // pred_check
    _
  $region11: #{tpu_custom_call.1} parent=0 // pred_check_branch
    %15 = sbr.rel (0) target = $region13
  $region12: #{tpu_custom_call.1} parent=0 // pred_region
    _
  $region13: #{tpu_custom_call.1} parent=0 // pred_fallthru
    _
  // Predicated region
  $region14: #{tpu_custom_call.1} parent=0 // pred_check
    _
  $region15: #{tpu_custom_call.1} parent=0 // pred_check_branch
    %17 = sbr.rel (0) target = $region17
  $region16: #{tpu_custom_call.1} parent=0 // pred_region
    _
  $region17: #{tpu_custom_call.1} parent=0 // pred_fallthru
    _
  // Predicated region
  $region18: #{tpu_custom_call.1} parent=0 // pred_check
    _
  $region19: #{tpu_custom_call.1} parent=0 // pred_check_branch
    %19 = sbr.rel (0) target = $region21
  $region20: #{tpu_custom_call.1} parent=0 // pred_region
    _
  $region21: #{tpu_custom_call.1} parent=0 // pred_fallthru
    _
  %v20 = vld [vmem:[%s0] sm:$0xff]
  %v21 = vld [vmem:[%s0 + $0x8] sm:$0xff]
  %v22 = vld [vmem:[%s0 + $0x10] sm:$0xff]
  %v23 = vld [vmem:[%s0 + $0x18] sm:$0xff]
  %v24 = vld [vmem:[%s1] sm:$0xff]
  %v25 = vld [vmem:[%s1 + $0x8] sm:$0xff]
  %v26 = vld [vmem:[%s1 + $0x10] sm:$0xff]
  %v27 = vld [vmem:[%s1 + $0x18] sm:$0xff]
  %v28 = vld [vmem:[%s1 + $0x20] sm:$0xff]
  %v29 = vld [vmem:[%s1 + $0x28] sm:$0xff]
  %v30 = vld [vmem:[%s1 + $0x30] sm:$0xff]
  %v31 = vld [vmem:[%s1 + $0x38] sm:$0xff]
  %v32 = vld [vmem:[%s2] sm:$0x3]
  %v33 = vld [vmem:[%s2 + $0x2] sm:$0x3]
  %v34 = vld [vmem:[%s2 + $0x4] sm:$0x3]
  %v35 = vld [vmem:[%s2 + $0x6] sm:$0x3]
  %v36 = vld [vmem:[%s3] sm:$0xff]
  %v37 = vld [vmem:[%s3 + $0x8] sm:$0xff]
  %v38 = vld [vmem:[%s3 + $0x10] sm:$0xff]
  %v39 = vld [vmem:[%s3 + $0x18] sm:$0xff]
  %v40 = vld [vmem:[%s3 + $0x20] sm:$0xff]
  %v41 = vld [vmem:[%s3 + $0x28] sm:$0xff]
  %v42 = vld [vmem:[%s3 + $0x30] sm:$0xff]
  %v43 = vld [vmem:[%s3 + $0x38] sm:$0xff]
  %v44 = vld [vmem:[%s3 + $0x40] sm:$0xff]
  %v45 = vld [vmem:[%s3 + $0x48] sm:$0xff]
  %v46 = vld [vmem:[%s3 + $0x50] sm:$0xff]
  %v47 = vld [vmem:[%s3 + $0x58] sm:$0xff]
  %v48 = vld [vmem:[%s3 + $0x60] sm:$0xff]
  %v49 = vld [vmem:[%s3 + $0x68] sm:$0xff]
  %v50 = vld [vmem:[%s3 + $0x70] sm:$0xff]
  %v51 = vld [vmem:[%s3 + $0x78] sm:$0xff]
  %v52 = vld [vmem:[%s3 + $0x80] sm:$0xff]
  %v53 = vld [vmem:[%s3 + $0x88] sm:$0xff]
  %v54 = vld [vmem:[%s3 + $0x90] sm:$0xff]
  %v55 = vld [vmem:[%s3 + $0x98] sm:$0xff]
  %v56 = vld [vmem:[%s3 + $0xa0] sm:$0xff]
  %v57 = vld [vmem:[%s3 + $0xa8] sm:$0xff]
  %v58 = vld [vmem:[%s3 + $0xb0] sm:$0xff]
  %v59 = vld [vmem:[%s3 + $0xb8] sm:$0xff]
  %v60 = vld [vmem:[%s3 + $0xc0] sm:$0xff]
  %v61 = vld [vmem:[%s3 + $0xc8] sm:$0xff]
  %v62 = vld [vmem:[%s3 + $0xd0] sm:$0xff]
  %v63 = vld [vmem:[%s3 + $0xd8] sm:$0xff]
  %v64 = vld [vmem:[%s3 + $0xe0] sm:$0xff]
  %v65 = vld [vmem:[%s3 + $0xe8] sm:$0xff]
  %v66 = vld [vmem:[%s3 + $0xf0] sm:$0xff]
  %v67 = vld [vmem:[%s3 + $0xf8] sm:$0xff]
  %v68 = vld [vmem:[%s3 + $0x100] sm:$0xff]
  %v69 = vld [vmem:[%s3 + $0x108] sm:$0xff]
  %v70 = vld [vmem:[%s3 + $0x110] sm:$0xff]
  %v71 = vld [vmem:[%s3 + $0x118] sm:$0xff]
  %v72 = vld [vmem:[%s3 + $0x120] sm:$0xff]
  %v73 = vld [vmem:[%s3 + $0x128] sm:$0xff]
  %v74 = vld [vmem:[%s3 + $0x130] sm:$0xff]
  %v75 = vld [vmem:[%s3 + $0x138] sm:$0xff]
  %v76 = vld [vmem:[%s3 + $0x140] sm:$0xff]
  %v77 = vld [vmem:[%s3 + $0x148] sm:$0xff]
  %v78 = vld [vmem:[%s3 + $0x150] sm:$0xff]
  %v79 = vld [vmem:[%s3 + $0x158] sm:$0xff]
  %v80 = vld [vmem:[%s3 + $0x160] sm:$0xff]
  %v81 = vld [vmem:[%s3 + $0x168] sm:$0xff]
  %v82 = vld [vmem:[%s3 + $0x170] sm:$0xff]
  %v83 = vld [vmem:[%s3 + $0x178] sm:$0xff]
  %v84 = vld [vmem:[%s3 + $0x180] sm:$0xff]
  %v85 = vld [vmem:[%s3 + $0x188] sm:$0xff]
  %v86 = vld [vmem:[%s3 + $0x190] sm:$0xff]
  %v87 = vld [vmem:[%s3 + $0x198] sm:$0xff]
  %v88 = vld [vmem:[%s3 + $0x1a0] sm:$0xff]
  %v89 = vld [vmem:[%s3 + $0x1a8] sm:$0xff]
  %v90 = vld [vmem:[%s3 + $0x1b0] sm:$0xff]
  %v91 = vld [vmem:[%s3 + $0x1b8] sm:$0xff]
  %v92 = vld [vmem:[%s3 + $0x1c0] sm:$0xff]
  %v93 = vld [vmem:[%s3 + $0x1c8] sm:$0xff]
  %v94 = vld [vmem:[%s3 + $0x1d0] sm:$0xff]
  %v95 = vld [vmem:[%s3 + $0x1d8] sm:$0xff]
  %v96 = vld [vmem:[%s3 + $0x1e0] sm:$0xff]
  %v97 = vld [vmem:[%s3 + $0x1e8] sm:$0xff]
  %v98 = vld [vmem:[%s3 + $0x1f0] sm:$0xff]
  %v99 = vld [vmem:[%s3 + $0x1f8] sm:$0xff]
  %v100 = vld [vmem:[%s3 + $0x200] sm:$0xff]
  %v101 = vld [vmem:[%s3 + $0x208] sm:$0xff]
  %v102 = vld [vmem:[%s3 + $0x210] sm:$0xff]
  %v103 = vld [vmem:[%s3 + $0x218] sm:$0xff]
  %v104 = vld [vmem:[%s3 + $0x220] sm:$0xff]
  %v105 = vld [vmem:[%s3 + $0x228] sm:$0xff]
  %v106 = vld [vmem:[%s3 + $0x230] sm:$0xff]
  %v107 = vld [vmem:[%s3 + $0x238] sm:$0xff]
  %v108 = vld [vmem:[%s3 + $0x240] sm:$0xff]
  %v109 = vld [vmem:[%s3 + $0x248] sm:$0xff]
  %v110 = vld [vmem:[%s3 + $0x250] sm:$0xff]
  %v111 = vld [vmem:[%s3 + $0x258] sm:$0xff]
  %v112 = vld [vmem:[%s3 + $0x260] sm:$0xff]
  %v113 = vld [vmem:[%s3 + $0x268] sm:$0xff]
  %v114 = vld [vmem:[%s3 + $0x270] sm:$0xff]
  %v115 = vld [vmem:[%s3 + $0x278] sm:$0xff]
  %v116 = vld [vmem:[%s3 + $0x280] sm:$0xff]
  %v117 = vld [vmem:[%s3 + $0x288] sm:$0xff]
  %v118 = vld [vmem:[%s3 + $0x290] sm:$0xff]
  %v119 = vld [vmem:[%s3 + $0x298] sm:$0xff]
  %v120 = vld [vmem:[%s3 + $0x2a0] sm:$0xff]
  %v121 = vld [vmem:[%s3 + $0x2a8] sm:$0xff]
  %v122 = vld [vmem:[%s3 + $0x2b0] sm:$0xff]
  %v123 = vld [vmem:[%s3 + $0x2b8] sm:$0xff]
  %v124 = vld [vmem:[%s3 + $0x2c0] sm:$0xff]
  %v125 = vld [vmem:[%s3 + $0x2c8] sm:$0xff]
  %v126 = vld [vmem:[%s3 + $0x2d0] sm:$0xff]
  %v127 = vld [vmem:[%s3 + $0x2d8] sm:$0xff]
  %v128 = vld [vmem:[%s3 + $0x2e0] sm:$0xff]
  %v129 = vld [vmem:[%s3 + $0x2e8] sm:$0xff]
  %v130 = vld [vmem:[%s3 + $0x2f0] sm:$0xff]
  %v131 = vld [vmem:[%s3 + $0x2f8] sm:$0xff]
  %v132 = vld [vmem:[%s3 + $0x300] sm:$0xff]
  %v133 = vld [vmem:[%s3 + $0x308] sm:$0xff]
  %v134 = vld [vmem:[%s3 + $0x310] sm:$0xff]
  %v135 = vld [vmem:[%s3 + $0x318] sm:$0xff]
  %v136 = vld [vmem:[%s3 + $0x320] sm:$0xff]
  %v137 = vld [vmem:[%s3 + $0x328] sm:$0xff]
  %v138 = vld [vmem:[%s3 + $0x330] sm:$0xff]
  %v139 = vld [vmem:[%s3 + $0x338] sm:$0xff]
  %v140 = vld [vmem:[%s3 + $0x340] sm:$0xff]
  %v141 = vld [vmem:[%s3 + $0x348] sm:$0xff]
  %v142 = vld [vmem:[%s3 + $0x350] sm:$0xff]
  %v143 = vld [vmem:[%s3 + $0x358] sm:$0xff]
  %v144 = vld [vmem:[%s3 + $0x360] sm:$0xff]
  %v145 = vld [vmem:[%s3 + $0x368] sm:$0xff]
  %v146 = vld [vmem:[%s3 + $0x370] sm:$0xff]
  %v147 = vld [vmem:[%s3 + $0x378] sm:$0xff]
  %v148 = vld [vmem:[%s3 + $0x380] sm:$0xff]
  %v149 = vld [vmem:[%s3 + $0x388] sm:$0xff]
  %v150 = vld [vmem:[%s3 + $0x390] sm:$0xff]
  %v151 = vld [vmem:[%s3 + $0x398] sm:$0xff]
  %v152 = vld [vmem:[%s3 + $0x3a0] sm:$0xff]
  %v153 = vld [vmem:[%s3 + $0x3a8] sm:$0xff]
  %v154 = vld [vmem:[%s3 + $0x3b0] sm:$0xff]
  %v155 = vld [vmem:[%s3 + $0x3b8] sm:$0xff]
  %v156 = vld [vmem:[%s3 + $0x3c0] sm:$0xff]
  %v157 = vld [vmem:[%s3 + $0x3c8] sm:$0xff]
  %v158 = vld [vmem:[%s3 + $0x3d0] sm:$0xff]
  %v159 = vld [vmem:[%s3 + $0x3d8] sm:$0xff]
  %v160 = vld [vmem:[%s3 + $0x3e0] sm:$0xff]
  %v161 = vld [vmem:[%s3 + $0x3e8] sm:$0xff]
  %v162 = vld [vmem:[%s3 + $0x3f0] sm:$0xff]
  %v163 = vld [vmem:[%s3 + $0x3f8] sm:$0xff]
  %v164 = vld [vmem:[%s4] sm:$0x1]
  %v165 = vld [vmem:[%s4 + $0x1] sm:$0x1]
  %v166 = vld [vmem:[%s4 + $0x2] sm:$0x1]
  %v167 = vld [vmem:[%s4 + $0x3] sm:$0x1]
  %v172 = vlaneseq
  %v173 = vshrl.u32 %v172, 7
  %v174 = vsub.s32 0, %v173
  %v175 = vrot.slane %v32, %v174
  %v176 = vlaneseq
  %v177 = vshrl.u32 %v176, 7
  %v178 = vsub.s32 1, %v177
  %v179 = vrot.slane %v32, %v178
  %v180 = vlaneseq
  %v181 = vshrl.u32 %v180, 7
  %v182 = vsub.s32 0, %v181
  %v183 = vrot.slane %v33, %v182
  %v184 = vlaneseq
  %v185 = vshrl.u32 %v184, 7
  %v186 = vsub.s32 1, %v185
  %v187 = vrot.slane %v33, %v186
  %v188 = vlaneseq
  %v189 = vshrl.u32 %v188, 7
  %v190 = vsub.s32 0, %v189
  %v191 = vrot.slane %v34, %v190
  %v192 = vlaneseq
  %v193 = vshrl.u32 %v192, 7
  %v194 = vsub.s32 1, %v193
  %v195 = vrot.slane %v34, %v194
  %v196 = vlaneseq
  %v197 = vshrl.u32 %v196, 7
  %v198 = vsub.s32 0, %v197
  %v199 = vrot.slane %v35, %v198
  %v200 = vlaneseq
  %v201 = vshrl.u32 %v200, 7
  %v202 = vsub.s32 1, %v201
  %v203 = vrot.slane %v35, %v202
  %vm212 = vcmask 64512
  %v214 = vsel %vm212, %v20, 0
  %216 = vmatprep.subr.mxu0 0.0
  %217 = vmatpush1.msra.mxu0 0.0
  %218 = vmatprep.subr.mxu0 0.0
  %219 = vmatpush1.msra.mxu0 0.0
  %220 = vmatprep.subr.mxu0 0.0
  %221 = vmatpush1.msra.mxu0 0.0
  %222 = vmatprep.subr.mxu0 0.0
  %223 = vmatpush1.msra.mxu0 0.0
  %224 = vmatprep.subr.mxu0 0.0
  %225 = vmatpush1.msra.mxu0 0.0
  %226 = vmatprep.subr.mxu0 0.0
  %227 = vmatpush1.msra.mxu0 0.0
  %228 = vmatprep.subr.mxu0 0.0
  %229 = vmatpush1.msra.mxu0 0.0
  %230 = vmatprep.subr.mxu0 0.0
  %231 = vmatpush1.msra.mxu0 0.0
  %232 = vmatprep.subr.mxu0 0.0
  %233 = vmatpush1.msra.mxu0 0.0
  %234 = vmatprep.subr.mxu0 0.0
  %235 = vmatpush1.msra.mxu0 0.0
  %236 = vmatprep.subr.mxu0 0.0
  %237 = vmatpush1.msra.mxu0 0.0
  %238 = vmatprep.subr.mxu0 0.0
  %239 = vmatpush1.msra.mxu0 0.0
  %240 = vmatprep.subr.mxu0 0.0
  %241 = vmatpush1.msra.mxu0 0.0
  %242 = vmatprep.subr.mxu0 0.0
  %243 = vmatpush1.msra.mxu0 0.0
  %244 = vmatprep.subr.mxu0 0.0
  %245 = vmatpush1.msra.mxu0 0.0
  %246 = vmatprep.subr.mxu0 %v25
  %247 = vmatpush1.msra.mxu0 %v24
  %248 = vmatprep.subr.mxu0 0.0
  %249 = vmatpush2.msra.mxu0 0.0
  %250 = vmatprep.subr.mxu0 0.0
  %251 = vmatpush2.msra.mxu0 0.0
  %252 = vmatprep.subr.mxu0 0.0
  %253 = vmatpush2.msra.mxu0 0.0
  %254 = vmatprep.subr.mxu0 0.0
  %255 = vmatpush2.msra.mxu0 0.0
  %256 = vmatprep.subr.mxu0 0.0
  %257 = vmatpush2.msra.mxu0 0.0
  %258 = vmatprep.subr.mxu0 0.0
  %259 = vmatpush2.msra.mxu0 0.0
  %260 = vmatprep.subr.mxu0 0.0
  %261 = vmatpush2.msra.mxu0 0.0
  %262 = vmatprep.subr.mxu0 0.0
  %263 = vmatpush2.msra.mxu0 0.0
  %264 = vmatprep.subr.mxu0 0.0
  %265 = vmatpush2.msra.mxu0 0.0
  %266 = vmatprep.subr.mxu0 0.0
  %267 = vmatpush2.msra.mxu0 0.0
  %268 = vmatprep.subr.mxu0 0.0
  %269 = vmatpush2.msra.mxu0 0.0
  %270 = vmatprep.subr.mxu0 0.0
  %271 = vmatpush2.msra.mxu0 0.0
  %272 = vmatprep.subr.mxu0 0.0
  %273 = vmatpush2.msra.mxu0 0.0
  %274 = vmatprep.subr.mxu0 0.0
  %275 = vmatpush2.msra.mxu0 0.0
  %276 = vmatprep.subr.mxu0 0.0
  %277 = vmatpush2.msra.mxu0 0.0
  %278 = vmatprep.subr.mxu0 0.0
  %279 = vmatpush2.msra.mxu0 0.0
  %280 = vmatprep.mubr.f32.mxu0 0.0
  %281 = vmatmul.mubr.f32.gmra.mxu0 %v214
  %v282 = vpop.f32.mrf.mxu0
  %v283 = vadd.f32 %v175, %v282
  %v284 = vpop.f32.mrf.mxu0
  %v285 = vadd.f32 %v179, %v284
  %286 = vdwg.mxu0
  %v288 = vsel %vm212, %v21, 0
  %290 = vmatprep.subr.mxu0 0.0
  %291 = vmatpush1.msra.mxu0 0.0
  %292 = vmatprep.subr.mxu0 0.0
  %293 = vmatpush1.msra.mxu0 0.0
  %294 = vmatprep.subr.mxu0 0.0
  %295 = vmatpush1.msra.mxu0 0.0
  %296 = vmatprep.subr.mxu0 0.0
  %297 = vmatpush1.msra.mxu0 0.0
  %298 = vmatprep.subr.mxu0 0.0
  %299 = vmatpush1.msra.mxu0 0.0
  %300 = vmatprep.subr.mxu0 0.0
  %301 = vmatpush1.msra.mxu0 0.0
  %302 = vmatprep.subr.mxu0 0.0
  %303 = vmatpush1.msra.mxu0 0.0
  %304 = vmatprep.subr.mxu0 0.0
  %305 = vmatpush1.msra.mxu0 0.0
  %306 = vmatprep.subr.mxu0 0.0
  %307 = vmatpush1.msra.mxu0 0.0
  %308 = vmatprep.subr.mxu0 0.0
  %309 = vmatpush1.msra.mxu0 0.0
  %310 = vmatprep.subr.mxu0 0.0
  %311 = vmatpush1.msra.mxu0 0.0
  %312 = vmatprep.subr.mxu0 0.0
  %313 = vmatpush1.msra.mxu0 0.0
  %314 = vmatprep.subr.mxu0 0.0
  %315 = vmatpush1.msra.mxu0 0.0
  %316 = vmatprep.subr.mxu0 0.0
  %317 = vmatpush1.msra.mxu0 0.0
  %318 = vmatprep.subr.mxu0 0.0
  %319 = vmatpush1.msra.mxu0 0.0
  %320 = vmatprep.subr.mxu0 %v27
  %321 = vmatpush1.msra.mxu0 %v26
  %322 = vmatprep.subr.mxu0 0.0
  %323 = vmatpush2.msra.mxu0 0.0
  %324 = vmatprep.subr.mxu0 0.0
  %325 = vmatpush2.msra.mxu0 0.0
  %326 = vmatprep.subr.mxu0 0.0
  %327 = vmatpush2.msra.mxu0 0.0
  %328 = vmatprep.subr.mxu0 0.0
  %329 = vmatpush2.msra.mxu0 0.0
  %330 = vmatprep.subr.mxu0 0.0
  %331 = vmatpush2.msra.mxu0 0.0
  %332 = vmatprep.subr.mxu0 0.0
  %333 = vmatpush2.msra.mxu0 0.0
  %334 = vmatprep.subr.mxu0 0.0
  %335 = vmatpush2.msra.mxu0 0.0
  %336 = vmatprep.subr.mxu0 0.0
  %337 = vmatpush2.msra.mxu0 0.0
  %338 = vmatprep.subr.mxu0 0.0
  %339 = vmatpush2.msra.mxu0 0.0
  %340 = vmatprep.subr.mxu0 0.0
  %341 = vmatpush2.msra.mxu0 0.0
  %342 = vmatprep.subr.mxu0 0.0
  %343 = vmatpush2.msra.mxu0 0.0
  %344 = vmatprep.subr.mxu0 0.0
  %345 = vmatpush2.msra.mxu0 0.0
  %346 = vmatprep.subr.mxu0 0.0
  %347 = vmatpush2.msra.mxu0 0.0
  %348 = vmatprep.subr.mxu0 0.0
  %349 = vmatpush2.msra.mxu0 0.0
  %350 = vmatprep.subr.mxu0 0.0
  %351 = vmatpush2.msra.mxu0 0.0
  %352 = vmatprep.subr.mxu0 0.0
  %353 = vmatpush2.msra.mxu0 0.0
  %354 = vmatprep.mubr.f32.mxu0 0.0
  %355 = vmatmul.mubr.f32.gmra.mxu0 %v288
  %v356 = vpop.f32.mrf.mxu0
  %v357 = vadd.f32 %v183, %v356
  %v358 = vpop.f32.mrf.mxu0
  %v359 = vadd.f32 %v187, %v358
  %360 = vdwg.mxu0
  %v362 = vsel %vm212, %v22, 0
  %364 = vmatprep.subr.mxu0 0.0
  %365 = vmatpush1.msra.mxu0 0.0
  %366 = vmatprep.subr.mxu0 0.0
  %367 = vmatpush1.msra.mxu0 0.0
  %368 = vmatprep.subr.mxu0 0.0
  %369 = vmatpush1.msra.mxu0 0.0
  %370 = vmatprep.subr.mxu0 0.0
  %371 = vmatpush1.msra.mxu0 0.0
  %372 = vmatprep.subr.mxu0 0.0
  %373 = vmatpush1.msra.mxu0 0.0
  %374 = vmatprep.subr.mxu0 0.0
  %375 = vmatpush1.msra.mxu0 0.0
  %376 = vmatprep.subr.mxu0 0.0
  %377 = vmatpush1.msra.mxu0 0.0
  %378 = vmatprep.subr.mxu0 0.0
  %379 = vmatpush1.msra.mxu0 0.0
  %380 = vmatprep.subr.mxu0 0.0
  %381 = vmatpush1.msra.mxu0 0.0
  %382 = vmatprep.subr.mxu0 0.0
  %383 = vmatpush1.msra.mxu0 0.0
  %384 = vmatprep.subr.mxu0 0.0
  %385 = vmatpush1.msra.mxu0 0.0
  %386 = vmatprep.subr.mxu0 0.0
  %387 = vmatpush1.msra.mxu0 0.0
  %388 = vmatprep.subr.mxu0 0.0
  %389 = vmatpush1.msra.mxu0 0.0
  %390 = vmatprep.subr.mxu0 0.0
  %391 = vmatpush1.msra.mxu0 0.0
  %392 = vmatprep.subr.mxu0 0.0
  %393 = vmatpush1.msra.mxu0 0.0
  %394 = vmatprep.subr.mxu0 %v29
  %395 = vmatpush1.msra.mxu0 %v28
  %396 = vmatprep.subr.mxu0 0.0
  %397 = vmatpush2.msra.mxu0 0.0
  %398 = vmatprep.subr.mxu0 0.0
  %399 = vmatpush2.msra.mxu0 0.0
  %400 = vmatprep.subr.mxu0 0.0
  %401 = vmatpush2.msra.mxu0 0.0
  %402 = vmatprep.subr.mxu0 0.0
  %403 = vmatpush2.msra.mxu0 0.0
  %404 = vmatprep.subr.mxu0 0.0
  %405 = vmatpush2.msra.mxu0 0.0
  %406 = vmatprep.subr.mxu0 0.0
  %407 = vmatpush2.msra.mxu0 0.0
  %408 = vmatprep.subr.mxu0 0.0
  %409 = vmatpush2.msra.mxu0 0.0
  %410 = vmatprep.subr.mxu0 0.0
  %411 = vmatpush2.msra.mxu0 0.0
  %412 = vmatprep.subr.mxu0 0.0
  %413 = vmatpush2.msra.mxu0 0.0
  %414 = vmatprep.subr.mxu0 0.0
  %415 = vmatpush2.msra.mxu0 0.0
  %416 = vmatprep.subr.mxu0 0.0
  %417 = vmatpush2.msra.mxu0 0.0
  %418 = vmatprep.subr.mxu0 0.0
  %419 = vmatpush2.msra.mxu0 0.0
  %420 = vmatprep.subr.mxu0 0.0
  %421 = vmatpush2.msra.mxu0 0.0
  %422 = vmatprep.subr.mxu0 0.0
  %423 = vmatpush2.msra.mxu0 0.0
  %424 = vmatprep.subr.mxu0 0.0
  %425 = vmatpush2.msra.mxu0 0.0
  %426 = vmatprep.subr.mxu0 0.0
  %427 = vmatpush2.msra.mxu0 0.0
  %428 = vmatprep.mubr.f32.mxu0 0.0
  %429 = vmatmul.mubr.f32.gmra.mxu0 %v362
  %v430 = vpop.f32.mrf.mxu0
  %v431 = vadd.f32 %v191, %v430
  %v432 = vpop.f32.mrf.mxu0
  %v433 = vadd.f32 %v195, %v432
  %434 = vdwg.mxu0
  %v436 = vsel %vm212, %v23, 0
  %438 = vmatprep.subr.mxu0 0.0
  %439 = vmatpush1.msra.mxu0 0.0
  %440 = vmatprep.subr.mxu0 0.0
  %441 = vmatpush1.msra.mxu0 0.0
  %442 = vmatprep.subr.mxu0 0.0
  %443 = vmatpush1.msra.mxu0 0.0
  %444 = vmatprep.subr.mxu0 0.0
  %445 = vmatpush1.msra.mxu0 0.0
  %446 = vmatprep.subr.mxu0 0.0
  %447 = vmatpush1.msra.mxu0 0.0
  %448 = vmatprep.subr.mxu0 0.0
  %449 = vmatpush1.msra.mxu0 0.0
  %450 = vmatprep.subr.mxu0 0.0
  %451 = vmatpush1.msra.mxu0 0.0
  %452 = vmatprep.subr.mxu0 0.0
  %453 = vmatpush1.msra.mxu0 0.0
  %454 = vmatprep.subr.mxu0 0.0
  %455 = vmatpush1.msra.mxu0 0.0
  %456 = vmatprep.subr.mxu0 0.0
  %457 = vmatpush1.msra.mxu0 0.0
  %458 = vmatprep.subr.mxu0 0.0
  %459 = vmatpush1.msra.mxu0 0.0
  %460 = vmatprep.subr.mxu0 0.0
  %461 = vmatpush1.msra.mxu0 0.0
  %462 = vmatprep.subr.mxu0 0.0
  %463 = vmatpush1.msra.mxu0 0.0
  %464 = vmatprep.subr.mxu0 0.0
  %465 = vmatpush1.msra.mxu0 0.0
  %466 = vmatprep.subr.mxu0 0.0
  %467 = vmatpush1.msra.mxu0 0.0
  %468 = vmatprep.subr.mxu0 %v31
  %469 = vmatpush1.msra.mxu0 %v30
  %470 = vmatprep.subr.mxu0 0.0
  %471 = vmatpush2.msra.mxu0 0.0
  %472 = vmatprep.subr.mxu0 0.0
  %473 = vmatpush2.msra.mxu0 0.0
  %474 = vmatprep.subr.mxu0 0.0
  %475 = vmatpush2.msra.mxu0 0.0
  %476 = vmatprep.subr.mxu0 0.0
  %477 = vmatpush2.msra.mxu0 0.0
  %478 = vmatprep.subr.mxu0 0.0
  %479 = vmatpush2.msra.mxu0 0.0
  %480 = vmatprep.subr.mxu0 0.0
  %481 = vmatpush2.msra.mxu0 0.0
  %482 = vmatprep.subr.mxu0 0.0
  %483 = vmatpush2.msra.mxu0 0.0
  %484 = vmatprep.subr.mxu0 0.0
  %485 = vmatpush2.msra.mxu0 0.0
  %486 = vmatprep.subr.mxu0 0.0
  %487 = vmatpush2.msra.mxu0 0.0
  %488 = vmatprep.subr.mxu0 0.0
  %489 = vmatpush2.msra.mxu0 0.0
  %490 = vmatprep.subr.mxu0 0.0
  %491 = vmatpush2.msra.mxu0 0.0
  %492 = vmatprep.subr.mxu0 0.0
  %493 = vmatpush2.msra.mxu0 0.0
  %494 = vmatprep.subr.mxu0 0.0
  %495 = vmatpush2.msra.mxu0 0.0
  %496 = vmatprep.subr.mxu0 0.0
  %497 = vmatpush2.msra.mxu0 0.0
  %498 = vmatprep.subr.mxu0 0.0
  %499 = vmatpush2.msra.mxu0 0.0
  %500 = vmatprep.subr.mxu0 0.0
  %501 = vmatpush2.msra.mxu0 0.0
  %502 = vmatprep.mubr.f32.mxu0 0.0
  %503 = vmatmul.mubr.f32.gmra.mxu0 %v436
  %v504 = vpop.f32.mrf.mxu0
  %v505 = vadd.f32 %v199, %v504
  %v506 = vpop.f32.mrf.mxu0
  %v507 = vadd.f32 %v203, %v506
  %508 = vdwg.mxu0
  %v509 = vtanh.pop %v283
  %v510 = vtanh.pop %v285
  %v511 = vtanh.pop %v357
  %v512 = vtanh.pop %v359
  %v513 = vtanh.pop %v431
  %v514 = vtanh.pop %v433
  %v515 = vtanh.pop %v505
  %v516 = vtanh.pop %v507
  %v521 = vlaneseq
  %v522 = vshrl.u32 %v521, 7
  %v523 = vsub.s32 0, %v522
  %v524 = vrot.slane %v164, %v523
  %v525 = vlaneseq
  %v526 = vshrl.u32 %v525, 7
  %v527 = vsub.s32 0, %v526
  %v528 = vrot.slane %v165, %v527
  %v529 = vlaneseq
  %v530 = vshrl.u32 %v529, 7
  %v531 = vsub.s32 0, %v530
  %v532 = vrot.slane %v166, %v531
  %v533 = vlaneseq
  %v534 = vshrl.u32 %v533, 7
  %v535 = vsub.s32 0, %v534
  %v536 = vrot.slane %v167, %v535
  %541 = vmatprep.subr.mxu0 0.0
  %542 = vmatpush1.msra.mxu0 %v51
  %543 = vmatprep.subr.mxu0 0.0
  %544 = vmatpush1.msra.mxu0 %v50
  %545 = vmatprep.subr.mxu0 0.0
  %546 = vmatpush1.msra.mxu0 %v49
  %547 = vmatprep.subr.mxu0 0.0
  %548 = vmatpush1.msra.mxu0 %v48
  %549 = vmatprep.subr.mxu0 0.0
  %550 = vmatpush1.msra.mxu0 %v47
  %551 = vmatprep.subr.mxu0 0.0
  %552 = vmatpush1.msra.mxu0 %v46
  %553 = vmatprep.subr.mxu0 0.0
  %554 = vmatpush1.msra.mxu0 %v45
  %555 = vmatprep.subr.mxu0 0.0
  %556 = vmatpush1.msra.mxu0 %v44
  %557 = vmatprep.subr.mxu0 0.0
  %558 = vmatpush1.msra.mxu0 %v43
  %559 = vmatprep.subr.mxu0 0.0
  %560 = vmatpush1.msra.mxu0 %v42
  %561 = vmatprep.subr.mxu0 0.0
  %562 = vmatpush1.msra.mxu0 %v41
  %563 = vmatprep.subr.mxu0 0.0
  %564 = vmatpush1.msra.mxu0 %v40
  %565 = vmatprep.subr.mxu0 0.0
  %566 = vmatpush1.msra.mxu0 %v39
  %567 = vmatprep.subr.mxu0 0.0
  %568 = vmatpush1.msra.mxu0 %v38
  %569 = vmatprep.subr.mxu0 0.0
  %570 = vmatpush1.msra.mxu0 %v37
  %571 = vmatprep.subr.mxu0 0.0
  %572 = vmatpush1.msra.mxu0 %v36
  %573 = vmatprep.subr.mxu0 0.0
  %574 = vmatpush2.msra.mxu0 %v67
  %575 = vmatprep.subr.mxu0 0.0
  %576 = vmatpush2.msra.mxu0 %v66
  %577 = vmatprep.subr.mxu0 0.0
  %578 = vmatpush2.msra.mxu0 %v65
  %579 = vmatprep.subr.mxu0 0.0
  %580 = vmatpush2.msra.mxu0 %v64
  %581 = vmatprep.subr.mxu0 0.0
  %582 = vmatpush2.msra.mxu0 %v63
  %583 = vmatprep.subr.mxu0 0.0
  %584 = vmatpush2.msra.mxu0 %v62
  %585 = vmatprep.subr.mxu0 0.0
  %586 = vmatpush2.msra.mxu0 %v61
  %587 = vmatprep.subr.mxu0 0.0
  %588 = vmatpush2.msra.mxu0 %v60
  %589 = vmatprep.subr.mxu0 0.0
  %590 = vmatpush2.msra.mxu0 %v59
  %591 = vmatprep.subr.mxu0 0.0
  %592 = vmatpush2.msra.mxu0 %v58
  %593 = vmatprep.subr.mxu0 0.0
  %594 = vmatpush2.msra.mxu0 %v57
  %595 = vmatprep.subr.mxu0 0.0
  %596 = vmatpush2.msra.mxu0 %v56
  %597 = vmatprep.subr.mxu0 0.0
  %598 = vmatpush2.msra.mxu0 %v55
  %599 = vmatprep.subr.mxu0 0.0
  %600 = vmatpush2.msra.mxu0 %v54
  %601 = vmatprep.subr.mxu0 0.0
  %602 = vmatpush2.msra.mxu0 %v53
  %603 = vmatprep.subr.mxu0 0.0
  %604 = vmatpush2.msra.mxu0 %v52
  %605 = vmatprep.mubr.f32.mxu0 %v510
  %606 = vmatmul.mubr.f32.gmra.mxu0 %v509
  %v607 = vpop.f32.mrf.mxu0
  %v608 = vadd.f32 %v524, %v607
  %v609 = vpop.f32.mrf.mxu0
  %610 = vdwg.mxu0
  %611 = vmatprep.subr.mxu0 0.0
  %612 = vmatpush1.msra.mxu0 %v83
  %613 = vmatprep.subr.mxu0 0.0
  %614 = vmatpush1.msra.mxu0 %v82
  %615 = vmatprep.subr.mxu0 0.0
  %616 = vmatpush1.msra.mxu0 %v81
  %617 = vmatprep.subr.mxu0 0.0
  %618 = vmatpush1.msra.mxu0 %v80
  %619 = vmatprep.subr.mxu0 0.0
  %620 = vmatpush1.msra.mxu0 %v79
  %621 = vmatprep.subr.mxu0 0.0
  %622 = vmatpush1.msra.mxu0 %v78
  %623 = vmatprep.subr.mxu0 0.0
  %624 = vmatpush1.msra.mxu0 %v77
  %625 = vmatprep.subr.mxu0 0.0
  %626 = vmatpush1.msra.mxu0 %v76
  %627 = vmatprep.subr.mxu0 0.0
  %628 = vmatpush1.msra.mxu0 %v75
  %629 = vmatprep.subr.mxu0 0.0
  %630 = vmatpush1.msra.mxu0 %v74
  %631 = vmatprep.subr.mxu0 0.0
  %632 = vmatpush1.msra.mxu0 %v73
  %633 = vmatprep.subr.mxu0 0.0
  %634 = vmatpush1.msra.mxu0 %v72
  %635 = vmatprep.subr.mxu0 0.0
  %636 = vmatpush1.msra.mxu0 %v71
  %637 = vmatprep.subr.mxu0 0.0
  %638 = vmatpush1.msra.mxu0 %v70
  %639 = vmatprep.subr.mxu0 0.0
  %640 = vmatpush1.msra.mxu0 %v69
  %641 = vmatprep.subr.mxu0 0.0
  %642 = vmatpush1.msra.mxu0 %v68
  %643 = vmatprep.subr.mxu0 0.0
  %644 = vmatpush2.msra.mxu0 %v99
  %645 = vmatprep.subr.mxu0 0.0
  %646 = vmatpush2.msra.mxu0 %v98
  %647 = vmatprep.subr.mxu0 0.0
  %648 = vmatpush2.msra.mxu0 %v97
  %649 = vmatprep.subr.mxu0 0.0
  %650 = vmatpush2.msra.mxu0 %v96
  %651 = vmatprep.subr.mxu0 0.0
  %652 = vmatpush2.msra.mxu0 %v95
  %653 = vmatprep.subr.mxu0 0.0
  %654 = vmatpush2.msra.mxu0 %v94
  %655 = vmatprep.subr.mxu0 0.0
  %656 = vmatpush2.msra.mxu0 %v93
  %657 = vmatprep.subr.mxu0 0.0
  %658 = vmatpush2.msra.mxu0 %v92
  %659 = vmatprep.subr.mxu0 0.0
  %660 = vmatpush2.msra.mxu0 %v91
  %661 = vmatprep.subr.mxu0 0.0
  %662 = vmatpush2.msra.mxu0 %v90
  %663 = vmatprep.subr.mxu0 0.0
  %664 = vmatpush2.msra.mxu0 %v89
  %665 = vmatprep.subr.mxu0 0.0
  %666 = vmatpush2.msra.mxu0 %v88
  %667 = vmatprep.subr.mxu0 0.0
  %668 = vmatpush2.msra.mxu0 %v87
  %669 = vmatprep.subr.mxu0 0.0
  %670 = vmatpush2.msra.mxu0 %v86
  %671 = vmatprep.subr.mxu0 0.0
  %672 = vmatpush2.msra.mxu0 %v85
  %673 = vmatprep.subr.mxu0 0.0
  %674 = vmatpush2.msra.mxu0 %v84
  %675 = vmatprep.mubr.f32.mxu0 %v512
  %676 = vmatmul.mubr.f32.gmra.mxu0 %v511
  %v677 = vpop.f32.mrf.mxu0
  %v678 = vadd.f32 %v528, %v677
  %v679 = vpop.f32.mrf.mxu0
  %680 = vdwg.mxu0
  %681 = vmatprep.subr.mxu0 0.0
  %682 = vmatpush1.msra.mxu0 %v115
  %683 = vmatprep.subr.mxu0 0.0
  %684 = vmatpush1.msra.mxu0 %v114
  %685 = vmatprep.subr.mxu0 0.0
  %686 = vmatpush1.msra.mxu0 %v113
  %687 = vmatprep.subr.mxu0 0.0
  %688 = vmatpush1.msra.mxu0 %v112
  %689 = vmatprep.subr.mxu0 0.0
  %690 = vmatpush1.msra.mxu0 %v111
  %691 = vmatprep.subr.mxu0 0.0
  %692 = vmatpush1.msra.mxu0 %v110
  %693 = vmatprep.subr.mxu0 0.0
  %694 = vmatpush1.msra.mxu0 %v109
  %695 = vmatprep.subr.mxu0 0.0
  %696 = vmatpush1.msra.mxu0 %v108
  %697 = vmatprep.subr.mxu0 0.0
  %698 = vmatpush1.msra.mxu0 %v107
  %699 = vmatprep.subr.mxu0 0.0
  %700 = vmatpush1.msra.mxu0 %v106
  %701 = vmatprep.subr.mxu0 0.0
  %702 = vmatpush1.msra.mxu0 %v105
  %703 = vmatprep.subr.mxu0 0.0
  %704 = vmatpush1.msra.mxu0 %v104
  %705 = vmatprep.subr.mxu0 0.0
  %706 = vmatpush1.msra.mxu0 %v103
  %707 = vmatprep.subr.mxu0 0.0
  %708 = vmatpush1.msra.mxu0 %v102
  %709 = vmatprep.subr.mxu0 0.0
  %710 = vmatpush1.msra.mxu0 %v101
  %711 = vmatprep.subr.mxu0 0.0
  %712 = vmatpush1.msra.mxu0 %v100
  %713 = vmatprep.subr.mxu0 0.0
  %714 = vmatpush2.msra.mxu0 %v131
  %715 = vmatprep.subr.mxu0 0.0
  %716 = vmatpush2.msra.mxu0 %v130
  %717 = vmatprep.subr.mxu0 0.0
  %718 = vmatpush2.msra.mxu0 %v129
  %719 = vmatprep.subr.mxu0 0.0
  %720 = vmatpush2.msra.mxu0 %v128
  %721 = vmatprep.subr.mxu0 0.0
  %722 = vmatpush2.msra.mxu0 %v127
  %723 = vmatprep.subr.mxu0 0.0
  %724 = vmatpush2.msra.mxu0 %v126
  %725 = vmatprep.subr.mxu0 0.0
  %726 = vmatpush2.msra.mxu0 %v125
  %727 = vmatprep.subr.mxu0 0.0
  %728 = vmatpush2.msra.mxu0 %v124
  %729 = vmatprep.subr.mxu0 0.0
  %730 = vmatpush2.msra.mxu0 %v123
  %731 = vmatprep.subr.mxu0 0.0
  %732 = vmatpush2.msra.mxu0 %v122
  %733 = vmatprep.subr.mxu0 0.0
  %734 = vmatpush2.msra.mxu0 %v121
  %735 = vmatprep.subr.mxu0 0.0
  %736 = vmatpush2.msra.mxu0 %v120
  %737 = vmatprep.subr.mxu0 0.0
  %738 = vmatpush2.msra.mxu0 %v119
  %739 = vmatprep.subr.mxu0 0.0
  %740 = vmatpush2.msra.mxu0 %v118
  %741 = vmatprep.subr.mxu0 0.0
  %742 = vmatpush2.msra.mxu0 %v117
  %743 = vmatprep.subr.mxu0 0.0
  %744 = vmatpush2.msra.mxu0 %v116
  %745 = vmatprep.mubr.f32.mxu0 %v514
  %746 = vmatmul.mubr.f32.gmra.mxu0 %v513
  %v747 = vpop.f32.mrf.mxu0
  %v748 = vadd.f32 %v532, %v747
  %v749 = vpop.f32.mrf.mxu0
  %750 = vdwg.mxu0
  %751 = vmatprep.subr.mxu0 0.0
  %752 = vmatpush1.msra.mxu0 %v147
  %753 = vmatprep.subr.mxu0 0.0
  %754 = vmatpush1.msra.mxu0 %v146
  %755 = vmatprep.subr.mxu0 0.0
  %756 = vmatpush1.msra.mxu0 %v145
  %757 = vmatprep.subr.mxu0 0.0
  %758 = vmatpush1.msra.mxu0 %v144
  %759 = vmatprep.subr.mxu0 0.0
  %760 = vmatpush1.msra.mxu0 %v143
  %761 = vmatprep.subr.mxu0 0.0
  %762 = vmatpush1.msra.mxu0 %v142
  %763 = vmatprep.subr.mxu0 0.0
  %764 = vmatpush1.msra.mxu0 %v141
  %765 = vmatprep.subr.mxu0 0.0
  %766 = vmatpush1.msra.mxu0 %v140
  %767 = vmatprep.subr.mxu0 0.0
  %768 = vmatpush1.msra.mxu0 %v139
  %769 = vmatprep.subr.mxu0 0.0
  %770 = vmatpush1.msra.mxu0 %v138
  %771 = vmatprep.subr.mxu0 0.0
  %772 = vmatpush1.msra.mxu0 %v137
  %773 = vmatprep.subr.mxu0 0.0
  %774 = vmatpush1.msra.mxu0 %v136
  %775 = vmatprep.subr.mxu0 0.0
  %776 = vmatpush1.msra.mxu0 %v135
  %777 = vmatprep.subr.mxu0 0.0
  %778 = vmatpush1.msra.mxu0 %v134
  %779 = vmatprep.subr.mxu0 0.0
  %780 = vmatpush1.msra.mxu0 %v133
  %781 = vmatprep.subr.mxu0 0.0
  %782 = vmatpush1.msra.mxu0 %v132
  %783 = vmatprep.subr.mxu0 0.0
  %784 = vmatpush2.msra.mxu0 %v163
  %785 = vmatprep.subr.mxu0 0.0
  %786 = vmatpush2.msra.mxu0 %v162
  %787 = vmatprep.subr.mxu0 0.0
  %788 = vmatpush2.msra.mxu0 %v161
  %789 = vmatprep.subr.mxu0 0.0
  %790 = vmatpush2.msra.mxu0 %v160
  %791 = vmatprep.subr.mxu0 0.0
  %792 = vmatpush2.msra.mxu0 %v159
  %793 = vmatprep.subr.mxu0 0.0
  %794 = vmatpush2.msra.mxu0 %v158
  %795 = vmatprep.subr.mxu0 0.0
  %796 = vmatpush2.msra.mxu0 %v157
  %797 = vmatprep.subr.mxu0 0.0
  %798 = vmatpush2.msra.mxu0 %v156
  %799 = vmatprep.subr.mxu0 0.0
  %800 = vmatpush2.msra.mxu0 %v155
  %801 = vmatprep.subr.mxu0 0.0
  %802 = vmatpush2.msra.mxu0 %v154
  %803 = vmatprep.subr.mxu0 0.0
  %804 = vmatpush2.msra.mxu0 %v153
  %805 = vmatprep.subr.mxu0 0.0
  %806 = vmatpush2.msra.mxu0 %v152
  %807 = vmatprep.subr.mxu0 0.0
  %808 = vmatpush2.msra.mxu0 %v151
  %809 = vmatprep.subr.mxu0 0.0
  %810 = vmatpush2.msra.mxu0 %v150
  %811 = vmatprep.subr.mxu0 0.0
  %812 = vmatpush2.msra.mxu0 %v149
  %813 = vmatprep.subr.mxu0 0.0
  %814 = vmatpush2.msra.mxu0 %v148
  %815 = vmatprep.mubr.f32.mxu0 %v516
  %816 = vmatmul.mubr.f32.gmra.mxu0 %v515
  %v817 = vpop.f32.mrf.mxu0
  %v818 = vadd.f32 %v536, %v817
  %v819 = vpop.f32.mrf.mxu0
  %820 = vdwg.mxu0
  %vm821 = vcmask 31744
  %822 = vst.msk [vmem:[%s5] sm:$0xff] %vm821, %v608
  %823 = vst.msk [vmem:[%s5 + $0x8] sm:$0xff] %vm821, %v678
  %824 = vst.msk [vmem:[%s5 + $0x10] sm:$0xff] %vm821, %v748
  %825 = vst.msk [vmem:[%s5 + $0x18] sm:$0xff] %vm821, %v818
  // Predicated region
  $region22: #{tpu_custom_call.1} parent=0 // pred_check
    _
  $region23: #{tpu_custom_call.1} parent=0 // pred_check_branch
    %827 = sbr.rel (0) target = $region25
  $region24: #{tpu_custom_call.1} parent=0 // pred_region
    _
  $region25: #{tpu_custom_call.1} parent=0 // pred_fallthru
    _
  // Predicated region
  $region26: #{tpu_custom_call.1} parent=0 // pred_check
    _
  $region27: #{tpu_custom_call.1} parent=0 // pred_check_branch
    %829 = sbr.rel (0) target = $region29
  $region28: #{tpu_custom_call.1} parent=0 // pred_region
    _
  $region29: #{tpu_custom_call.1} parent=0 // pred_fallthru
    _

</llo_original>
